<compile_context>
chip_gen: v7x
topology: tpu7x:2x2x1
jax: 0.10.0
libtpu: 0.0.40
codegen_flags: <defaults>
</compile_context>

<pallas_src>
import functools

import jax
import jax.numpy as jnp
from jax.experimental import pallas as pl
from jax.experimental.pallas import tpu as pltpu


def _vmem():
    return pl.BlockSpec(memory_space=pltpu.MemorySpace.VMEM)


def _smem():
    return pl.BlockSpec(memory_space=pltpu.MemorySpace.SMEM)


def _softplus(v):
    # Numerically stable softplus on a small (1,1) array (EUP ops).
    return jnp.maximum(v, 0.0) + jnp.log1p(jnp.exp(-jnp.abs(v)))


# ---------------------------------------------------------------------------
# Fused kernel: hyper-net -> split -> rsample -> bmm+bias -> KL reduction.
# ---------------------------------------------------------------------------
def _fused_joint_sivi_kernel(scal_ref, noise_ref,
                             w1_ref, b1_ref, w2_ref, b2_ref, w3_ref, b3_ref,
                             x_ref, eps_w_ref, eps_b_ref,
                             out_ref, prior_ref, *,
                             num_mc, batch, dim_in, dim_out, prior_sigma):
    f32 = jnp.float32
    DW = dim_in * dim_out          # flat weight width (lane dim)
    MB = num_mc * batch            # flattened (MC, batch) rows

    # ---- 1) SIVI hyper-network: all num_MC noise rows in one MXU chain -----
    noise = noise_ref[...].astype(f32)
    h = jnp.tanh(jnp.dot(noise, w1_ref[...], preferred_element_type=f32)
                 + b1_ref[...])
    h = jnp.tanh(jnp.dot(h, w2_ref[...], preferred_element_type=f32)
                 + b2_ref[...])
    sivi = jnp.dot(h, w3_ref[...], preferred_element_type=f32) + b3_ref[...]

    # Lane-aligned static splits (dim_in*dim_out columns, then dim_out columns).
    w_mu = sivi[:, :DW]                       # (MC, DW)
    b_mu = sivi[:, DW:DW + dim_out]           # (MC, DO)

    # ---- 2) raw scalars from SMEM; softplus on the EUP in-kernel ------------
    w_std = _softplus(jnp.full((1, 1), scal_ref[0], f32))
    b_std = _softplus(jnp.full((1, 1), scal_ref[1], f32))
    prior_in = scal_ref[2]

    # ---- 3) reparameterized sampling (Normal.rsample), flat layouts ---------
    w = w_mu + w_std * eps_w_ref[...].astype(f32)     # (MC, DW)
    b = b_mu + b_std * eps_b_ref[...].astype(f32)     # (MC, DO)

    # ---- 4) bmm(x, w) + b without per-MC batched dots -----------------------
    # Division-free 0/1 selection matrices built from 2-D iotas:
    #   R  (DI, DW):  R[i, c]  = [c // DO == i]   -> repeats x along lanes
    #   Rb (MB, MC):  Rb[r, m] = [r // B  == m]   -> broadcasts w, b over batch
    #   E  (DW, DO):  E[c, o]  = [c %  DO == o]   -> strided lane reduction
    i_ids = jax.lax.broadcasted_iota(jnp.int32, (dim_in, DW), 0)
    c_ids = jax.lax.broadcasted_iota(jnp.int32, (dim_in, DW), 1)
    R = ((c_ids >= i_ids * dim_out)
         & (c_ids < (i_ids + 1) * dim_out)).astype(f32)

    r_ids = jax.lax.broadcasted_iota(jnp.int32, (MB, num_mc), 0)
    m_ids = jax.lax.broadcasted_iota(jnp.int32, (MB, num_mc), 1)
    Rb = ((r_ids >= m_ids * batch)
          & (r_ids < (m_ids + 1) * batch)).astype(f32)

    ce_ids = jax.lax.broadcasted_iota(jnp.int32, (DW, dim_out), 0).astype(f32)
    oe_ids = jax.lax.broadcasted_iota(jnp.int32, (DW, dim_out), 1).astype(f32)
    t = (ce_ids - oe_ids) / f32(dim_out)
    E = (t == jnp.floor(t)).astype(f32)

    x2 = x_ref[...].astype(f32)                               # (MB, DI)
    xr = jnp.dot(x2, R, preferred_element_type=f32)           # (MB, DW)
    wb = jnp.dot(Rb, w, preferred_element_type=f32)           # (MB, DW)
    bias = jnp.dot(Rb, b, preferred_element_type=f32)         # (MB, DO)
    out2 = jnp.dot(xr * wb, E, preferred_element_type=f32) + bias
    out_ref[...] = out2.astype(out_ref.dtype)                 # (MB, DO)

    # ---- 5) prior = prior_in + KL(N(w_mu,w_std)||N(0,ps)).mean(0).sum() -----
    inv_two_var = 0.5 / float(prior_sigma) ** 2               # static
    kl_const = (jnp.log(f32(prior_sigma) / w_std)
                + (w_std * w_std) * inv_two_var - 0.5)        # (1,1)
    kl_elem = kl_const + (w_mu * w_mu) * inv_two_var          # (MC, DW)
    prior_val = prior_in + jnp.sum(kl_elem) * f32(1.0 / num_mc)
    prior_ref[...] = jnp.broadcast_to(prior_val, (1, 1)).astype(prior_ref.dtype)


# ---------------------------------------------------------------------------
# Wrapper reproducing JointSIVILayer.forward semantics (single pallas_call).
# ---------------------------------------------------------------------------
def joint_sivi_layer_forward(x, prior, base_noise, params, eps_w, eps_b, *,
                             dim_in, dim_out, prior_sigma):
    assert x.ndim == 3, 'Input tensor not of shape [N_MC, BatchSize, Features]'
    assert x.shape[0] == base_noise.shape[0]
    assert base_noise.shape[1] == params['w1'].shape[0]
    num_mc, batch, _ = x.shape
    num_hidden = params['w1'].shape[1]
    dim_output_params = dim_in * dim_out + dim_out
    assert params['w3'].shape == (num_hidden, dim_output_params)

    # Raw scalars -> SMEM (softplus / KL constants computed in-kernel).
    scalars = jnp.stack([
        jnp.asarray(params['w_logsigma'], jnp.float32).reshape(()),
        jnp.asarray(params['b_logsigma'], jnp.float32).reshape(()),
        jnp.asarray(prior, jnp.float32).reshape(()),
    ])

    kernel = functools.partial(
        _fused_joint_sivi_kernel,
        num_mc=num_mc, batch=batch, dim_in=dim_in, dim_out=dim_out,
        prior_sigma=float(prior_sigma))

    out2d, prior_out = pl.pallas_call(
        kernel,
        out_shape=(
            jax.ShapeDtypeStruct((num_mc * batch, dim_out), jnp.float32),
            jax.ShapeDtypeStruct((1, 1), jnp.float32),
        ),
        in_specs=[_smem()] + [_vmem()] * 10,
        out_specs=(_vmem(), _vmem()),
    )(scalars,
      base_noise,
      params['w1'], params['b1'].reshape(1, -1),
      params['w2'], params['b2'].reshape(1, -1),
      params['w3'], params['b3'].reshape(1, -1),
      x.reshape(num_mc * batch, dim_in),            # free row-major reshapes
      eps_w.reshape(num_mc, dim_in * dim_out),
      eps_b)

    out = out2d.reshape(num_mc, batch, dim_out)     # free row-major reshape
    return out, None, prior_out[0, 0]


if __name__ == "__main__":
    # Small shapes consistent with the module: x is [N_MC, BatchSize, Features].
    num_MC, batch, dim_in, dim_out = 8, 2, 16, 8
    dim_noise_in = 32
    prior_sigma = 1.0
    dim_output_params = dim_in * dim_out + dim_out                      # 136
    num_hidden = min(dim_output_params,
                     int((dim_noise_in + dim_output_params) / 2))       # 84

    key = jax.random.PRNGKey(0)
    keys = jax.random.split(key, 10)

    def _w(k, shape, fan_in):
        return jax.random.normal(k, shape, jnp.float32) / jnp.sqrt(
            jnp.float32(fan_in))

    params = {
        'w1': _w(keys[0], (dim_noise_in, num_hidden), dim_noise_in),
        'b1': 0.01 * jax.random.normal(keys[1], (num_hidden,), jnp.float32),
        'w2': _w(keys[2], (num_hidden, num_hidden), num_hidden),
        'b2': 0.01 * jax.random.normal(keys[3], (num_hidden,), jnp.float32),
        'w3': _w(keys[4], (num_hidden, dim_output_params), num_hidden),
        'b3': 0.01 * jax.random.normal(keys[5], (dim_output_params,), jnp.float32),
        'w_logsigma': jnp.float32(-3.0),
        'b_logsigma': jnp.float32(-3.0),
    }

    x = jax.random.normal(keys[6], (num_MC, batch, dim_in), jnp.float32)
    base_noise = jax.random.normal(keys[7], (num_MC, dim_noise_in), jnp.float32)
    # Normal.rsample standard-normal draws, passed explicitly for determinism.
    eps_w = jax.random.normal(keys[8], (num_MC, dim_in, dim_out), jnp.float32)
    eps_b = jax.random.normal(keys[9], (num_MC, dim_out), jnp.float32)
    prior_in = jnp.float32(0.0)

    fwd = jax.jit(functools.partial(
        joint_sivi_layer_forward,
        dim_in=dim_in, dim_out=dim_out, prior_sigma=prior_sigma))
    out, none_out, prior_out = fwd(x, prior_in, base_noise, params, eps_w, eps_b)
    out = jax.block_until_ready(out)
    prior_out = jax.block_until_ready(prior_out)

    # ---- pure-JAX reference (same eps, HIGHEST-precision ground truth) ------
    hp = jax.lax.Precision.HIGHEST
    h = jnp.tanh(jnp.dot(base_noise, params['w1'], precision=hp) + params['b1'])
    h = jnp.tanh(jnp.dot(h, params['w2'], precision=hp) + params['b2'])
    sivi_ref = jnp.dot(h, params['w3'], precision=hp) + params['b3']
    w_mu_ref = sivi_ref[:, :dim_in * dim_out].reshape(num_MC, dim_in, dim_out)
    b_mu_ref = sivi_ref[:, dim_in * dim_out:]
    w_std_ref = jax.nn.softplus(params['w_logsigma'])
    b_std_ref = jax.nn.softplus(params['b_logsigma'])
    w_ref = w_mu_ref + w_std_ref * eps_w
    b_ref = b_mu_ref + b_std_ref * eps_b
    out_expected = (jnp.einsum('mbi,mio->mbo', x, w_ref, precision=hp)
                    + b_ref[:, None, :])
    kl_ref = (jnp.log(prior_sigma / w_std_ref)
              + (w_std_ref ** 2 + w_mu_ref ** 2) / (2.0 * prior_sigma ** 2)
              - 0.5)
    prior_expected = prior_in + kl_ref.mean(axis=0).sum()

    assert out.shape == (num_MC, batch, dim_out), out.shape
    assert none_out is None
    assert bool(jnp.allclose(out, out_expected, rtol=3e-2, atol=8e-2)), \
        float(jnp.max(jnp.abs(out - out_expected)))
    assert bool(jnp.allclose(prior_out, prior_expected, rtol=2e-2, atol=5e-2)), \
        (float(prior_out), float(prior_expected))

    print("KERNEL_OK")
</pallas_src>

<mosaic_0001>
module attributes {stable_mosaic.version = 11 : i64} {
  func.func @_fused_joint_sivi_kernel(%arg0: memref<3xf32, #tpu.memory_space<smem>>, %arg1: memref<8x32xf32, #tpu.memory_space<vmem>>, %arg2: memref<32x84xf32, #tpu.memory_space<vmem>>, %arg3: memref<1x84xf32, #tpu.memory_space<vmem>>, %arg4: memref<84x84xf32, #tpu.memory_space<vmem>>, %arg5: memref<1x84xf32, #tpu.memory_space<vmem>>, %arg6: memref<84x136xf32, #tpu.memory_space<vmem>>, %arg7: memref<1x136xf32, #tpu.memory_space<vmem>>, %arg8: memref<16x16xf32, #tpu.memory_space<vmem>>, %arg9: memref<8x128xf32, #tpu.memory_space<vmem>>, %arg10: memref<8x8xf32, #tpu.memory_space<vmem>>, %arg11: memref<16x8xf32, #tpu.memory_space<vmem>>, %arg12: memref<1x1xf32, #tpu.memory_space<vmem>>) attributes {dimension_semantics = [], scalar_prefetch = 0 : i64, scratch_operands = 0 : i64, tpu.core_type = #tpu.core_type<tc>} {
    %c0 = arith.constant 0 : index
    %c0_0 = arith.constant 0 : index
    %0 = vector.load %arg1[%c0, %c0_0] : memref<8x32xf32, #tpu.memory_space<vmem>>, vector<8x32xf32>
    %c0_1 = arith.constant 0 : index
    %c0_2 = arith.constant 0 : index
    %1 = vector.load %arg2[%c0_1, %c0_2] : memref<32x84xf32, #tpu.memory_space<vmem>>, vector<32x84xf32>
    %cst = arith.constant dense<0.000000e+00> : vector<8x84xf32>
    %2 = tpu.matmul %0, %1, %cst {dimension_numbers = #tpu.dot_dimension_numbers<[1], [0], [0], [1], [0, 0, 1, 1], [], []>} : vector<8x32xf32>, vector<32x84xf32>, vector<8x84xf32> -> vector<8x84xf32>
    %c0_3 = arith.constant 0 : index
    %c0_4 = arith.constant 0 : index
    %3 = vector.load %arg3[%c0_3, %c0_4] : memref<1x84xf32, #tpu.memory_space<vmem>>, vector<1x84xf32>
    %4 = vector.broadcast %3 : vector<1x84xf32> to vector<8x84xf32>
    %5 = arith.addf %2, %4 : vector<8x84xf32>
    %6 = math.tanh %5 : vector<8x84xf32>
    %c0_5 = arith.constant 0 : index
    %c0_6 = arith.constant 0 : index
    %7 = vector.load %arg4[%c0_5, %c0_6] : memref<84x84xf32, #tpu.memory_space<vmem>>, vector<84x84xf32>
    %cst_7 = arith.constant dense<0.000000e+00> : vector<8x84xf32>
    %8 = tpu.matmul %6, %7, %cst_7 {dimension_numbers = #tpu.dot_dimension_numbers<[1], [0], [0], [1], [0, 0, 1, 1], [], []>} : vector<8x84xf32>, vector<84x84xf32>, vector<8x84xf32> -> vector<8x84xf32>
    %c0_8 = arith.constant 0 : index
    %c0_9 = arith.constant 0 : index
    %9 = vector.load %arg5[%c0_8, %c0_9] : memref<1x84xf32, #tpu.memory_space<vmem>>, vector<1x84xf32>
    %10 = vector.broadcast %9 : vector<1x84xf32> to vector<8x84xf32>
    %11 = arith.addf %8, %10 : vector<8x84xf32>
    %12 = math.tanh %11 : vector<8x84xf32>
    %c0_10 = arith.constant 0 : index
    %c0_11 = arith.constant 0 : index
    %13 = vector.load %arg6[%c0_10, %c0_11] : memref<84x136xf32, #tpu.memory_space<vmem>>, vector<84x136xf32>
    %cst_12 = arith.constant dense<0.000000e+00> : vector<8x136xf32>
    %14 = tpu.matmul %12, %13, %cst_12 {dimension_numbers = #tpu.dot_dimension_numbers<[1], [0], [0], [1], [0, 0, 1, 1], [], []>} : vector<8x84xf32>, vector<84x136xf32>, vector<8x136xf32> -> vector<8x136xf32>
    %c0_13 = arith.constant 0 : index
    %c0_14 = arith.constant 0 : index
    %15 = vector.load %arg7[%c0_13, %c0_14] : memref<1x136xf32, #tpu.memory_space<vmem>>, vector<1x136xf32>
    %16 = vector.broadcast %15 : vector<1x136xf32> to vector<8x136xf32>
    %17 = arith.addf %14, %16 : vector<8x136xf32>
    %18 = vector.extract_strided_slice %17 {offsets = [0, 0], sizes = [8, 128], strides = [1, 1]} : vector<8x136xf32> to vector<8x128xf32>
    %19 = vector.extract_strided_slice %17 {offsets = [0, 128], sizes = [8, 8], strides = [1, 1]} : vector<8x136xf32> to vector<8x8xf32>
    %c0_15 = arith.constant 0 : index
    %20 = memref.load %arg0[%c0_15] : memref<3xf32, #tpu.memory_space<smem>>
    %21 = vector.broadcast %20 : f32 to vector<1x1xf32>
    %cst_16 = arith.constant 0.000000e+00 : f32
    %22 = vector.broadcast %cst_16 : f32 to vector<1x1xf32>
    %23 = arith.maximumf %21, %22 : vector<1x1xf32>
    %24 = math.absf %21 : vector<1x1xf32>
    %cst_17 = arith.constant 0.000000e+00 : f32
    %25 = vector.broadcast %cst_17 : f32 to vector<1x1xf32>
    %26 = arith.subf %25, %24 : vector<1x1xf32>
    %27 = math.exp %26 : vector<1x1xf32>
    %28 = math.log1p %27 : vector<1x1xf32>
    %29 = arith.addf %23, %28 : vector<1x1xf32>
    %c1 = arith.constant 1 : index
    %30 = memref.load %arg0[%c1] : memref<3xf32, #tpu.memory_space<smem>>
    %31 = vector.broadcast %30 : f32 to vector<1x1xf32>
    %cst_18 = arith.constant 0.000000e+00 : f32
    %32 = vector.broadcast %cst_18 : f32 to vector<1x1xf32>
    %33 = arith.maximumf %31, %32 : vector<1x1xf32>
    %34 = math.absf %31 : vector<1x1xf32>
    %cst_19 = arith.constant 0.000000e+00 : f32
    %35 = vector.broadcast %cst_19 : f32 to vector<1x1xf32>
    %36 = arith.subf %35, %34 : vector<1x1xf32>
    %37 = math.exp %36 : vector<1x1xf32>
    %38 = math.log1p %37 : vector<1x1xf32>
    %39 = arith.addf %33, %38 : vector<1x1xf32>
    %c2 = arith.constant 2 : index
    %40 = memref.load %arg0[%c2] : memref<3xf32, #tpu.memory_space<smem>>
    %c0_20 = arith.constant 0 : index
    %c0_21 = arith.constant 0 : index
    %41 = vector.load %arg9[%c0_20, %c0_21] : memref<8x128xf32, #tpu.memory_space<vmem>>, vector<8x128xf32>
    %42 = vector.broadcast %29 : vector<1x1xf32> to vector<8x128xf32>
    %43 = arith.mulf %42, %41 : vector<8x128xf32>
    %44 = arith.addf %18, %43 : vector<8x128xf32>
    %c0_22 = arith.constant 0 : index
    %c0_23 = arith.constant 0 : index
    %45 = vector.load %arg10[%c0_22, %c0_23] : memref<8x8xf32, #tpu.memory_space<vmem>>, vector<8x8xf32>
    %46 = vector.broadcast %39 : vector<1x1xf32> to vector<8x8xf32>
    %47 = arith.mulf %46, %45 : vector<8x8xf32>
    %48 = arith.addf %19, %47 : vector<8x8xf32>
    %49 = tpu.iota {dimensions = array<i32: 0>} : vector<16x128xi32>
    %50 = tpu.iota {dimensions = array<i32: 1>} : vector<16x128xi32>
    %c8_i32 = arith.constant 8 : i32
    %51 = vector.broadcast %c8_i32 : i32 to vector<16x128xi32>
    %52 = arith.muli %49, %51 : vector<16x128xi32>
    %53 = arith.cmpi sge, %50, %52 : vector<16x128xi32>
    %c1_i32 = arith.constant 1 : i32
    %54 = vector.broadcast %c1_i32 : i32 to vector<16x128xi32>
    %55 = arith.addi %49, %54 : vector<16x128xi32>
    %c8_i32_24 = arith.constant 8 : i32
    %56 = vector.broadcast %c8_i32_24 : i32 to vector<16x128xi32>
    %57 = arith.muli %55, %56 : vector<16x128xi32>
    %58 = arith.cmpi slt, %50, %57 : vector<16x128xi32>
    %59 = arith.andi %53, %58 : vector<16x128xi1>
    %60 = arith.extui %59 : vector<16x128xi1> to vector<16x128xi32>
    %61 = arith.sitofp %60 : vector<16x128xi32> to vector<16x128xf32>
    %62 = tpu.iota {dimensions = array<i32: 0>} : vector<16x8xi32>
    %63 = tpu.iota {dimensions = array<i32: 1>} : vector<16x8xi32>
    %c2_i32 = arith.constant 2 : i32
    %64 = vector.broadcast %c2_i32 : i32 to vector<16x8xi32>
    %65 = arith.muli %63, %64 : vector<16x8xi32>
    %66 = arith.cmpi sge, %62, %65 : vector<16x8xi32>
    %c1_i32_25 = arith.constant 1 : i32
    %67 = vector.broadcast %c1_i32_25 : i32 to vector<16x8xi32>
    %68 = arith.addi %63, %67 : vector<16x8xi32>
    %c2_i32_26 = arith.constant 2 : i32
    %69 = vector.broadcast %c2_i32_26 : i32 to vector<16x8xi32>
    %70 = arith.muli %68, %69 : vector<16x8xi32>
    %71 = arith.cmpi slt, %62, %70 : vector<16x8xi32>
    %72 = arith.andi %66, %71 : vector<16x8xi1>
    %73 = arith.extui %72 : vector<16x8xi1> to vector<16x8xi32>
    %74 = arith.sitofp %73 : vector<16x8xi32> to vector<16x8xf32>
    %75 = tpu.iota {dimensions = array<i32: 0>} : vector<128x8xi32>
    %76 = arith.sitofp %75 : vector<128x8xi32> to vector<128x8xf32>
    %77 = tpu.iota {dimensions = array<i32: 1>} : vector<128x8xi32>
    %78 = arith.sitofp %77 : vector<128x8xi32> to vector<128x8xf32>
    %79 = arith.subf %76, %78 : vector<128x8xf32>
    %cst_27 = arith.constant 8.000000e+00 : f32
    %80 = vector.broadcast %cst_27 : f32 to vector<128x8xf32>
    %81 = arith.divf %79, %80 : vector<128x8xf32>
    %82 = math.floor %81 : vector<128x8xf32>
    %83 = arith.cmpf oeq, %81, %82 : vector<128x8xf32>
    %84 = arith.extui %83 : vector<128x8xi1> to vector<128x8xi32>
    %85 = arith.sitofp %84 : vector<128x8xi32> to vector<128x8xf32>
    %c0_28 = arith.constant 0 : index
    %c0_29 = arith.constant 0 : index
    %86 = vector.load %arg8[%c0_28, %c0_29] : memref<16x16xf32, #tpu.memory_space<vmem>>, vector<16x16xf32>
    %cst_30 = arith.constant dense<0.000000e+00> : vector<16x128xf32>
    %87 = tpu.matmul %86, %61, %cst_30 {dimension_numbers = #tpu.dot_dimension_numbers<[1], [0], [0], [1], [0, 0, 1, 1], [], []>} : vector<16x16xf32>, vector<16x128xf32>, vector<16x128xf32> -> vector<16x128xf32>
    %cst_31 = arith.constant dense<0.000000e+00> : vector<16x128xf32>
    %88 = tpu.matmul %74, %44, %cst_31 {dimension_numbers = #tpu.dot_dimension_numbers<[1], [0], [0], [1], [0, 0, 1, 1], [], []>} : vector<16x8xf32>, vector<8x128xf32>, vector<16x128xf32> -> vector<16x128xf32>
    %cst_32 = arith.constant dense<0.000000e+00> : vector<16x8xf32>
    %89 = tpu.matmul %74, %48, %cst_32 {dimension_numbers = #tpu.dot_dimension_numbers<[1], [0], [0], [1], [0, 0, 1, 1], [], []>} : vector<16x8xf32>, vector<8x8xf32>, vector<16x8xf32> -> vector<16x8xf32>
    %90 = arith.mulf %87, %88 : vector<16x128xf32>
    %cst_33 = arith.constant dense<0.000000e+00> : vector<16x8xf32>
    %91 = tpu.matmul %90, %85, %cst_33 {dimension_numbers = #tpu.dot_dimension_numbers<[1], [0], [0], [1], [0, 0, 1, 1], [], []>} : vector<16x128xf32>, vector<128x8xf32>, vector<16x8xf32> -> vector<16x8xf32>
    %92 = arith.addf %91, %89 : vector<16x8xf32>
    %c0_34 = arith.constant 0 : index
    %c0_35 = arith.constant 0 : index
    %93 = vector.load %arg11[%c0_34, %c0_35] : memref<16x8xf32, #tpu.memory_space<vmem>>, vector<16x8xf32>
    tpu.vector_store %arg11[%c0_34, %c0_35], %92 {strides = array<i32>} : memref<16x8xf32, #tpu.memory_space<vmem>>, vector<16x8xf32>,
    %cst_36 = arith.constant 1.000000e+00 : f32
    %94 = vector.broadcast %cst_36 : f32 to vector<1x1xf32>
    %95 = arith.divf %94, %29 : vector<1x1xf32>
    %96 = math.log %95 : vector<1x1xf32>
    %97 = arith.mulf %29, %29 : vector<1x1xf32>
    %cst_37 = arith.constant 5.000000e-01 : f32
    %98 = vector.broadcast %cst_37 : f32 to vector<1x1xf32>
    %99 = arith.mulf %97, %98 : vector<1x1xf32>
    %100 = arith.addf %96, %99 : vector<1x1xf32>
    %cst_38 = arith.constant 5.000000e-01 : f32
    %101 = vector.broadcast %cst_38 : f32 to vector<1x1xf32>
    %102 = arith.subf %100, %101 : vector<1x1xf32>
    %103 = arith.mulf %18, %18 : vector<8x128xf32>
    %cst_39 = arith.constant 5.000000e-01 : f32
    %104 = vector.broadcast %cst_39 : f32 to vector<8x128xf32>
    %105 = arith.mulf %103, %104 : vector<8x128xf32>
    %106 = vector.broadcast %102 : vector<1x1xf32> to vector<8x128xf32>
    %107 = arith.addf %106, %105 : vector<8x128xf32>
    %108 = vector.shape_cast %107 : vector<8x128xf32> to vector<1x8x128xf32>
    %cst_40 = arith.constant dense<0.000000e+00> : vector<1xf32>
    %109 = vector.multi_reduction <add>, %108, %cst_40 [1, 2] : vector<1x8x128xf32> to vector<1xf32>
    %110 = vector.shape_cast %109 : vector<1xf32> to vector<1x1x1xf32>
    %111 = vector.extract %110[0, 0, 0] : f32 from vector<1x1x1xf32>
    %cst_41 = arith.constant 1.250000e-01 : f32
    %112 = arith.mulf %111, %cst_41 : f32
    %113 = arith.addf %40, %112 : f32
    %114 = vector.broadcast %113 : f32 to vector<1x1xf32>
    %c0_42 = arith.constant 0 : index
    %c0_43 = arith.constant 0 : index
    %115 = vector.load %arg12[%c0_42, %c0_43] : memref<1x1xf32, #tpu.memory_space<vmem>>, vector<1x1xf32>
    tpu.vector_store %arg12[%c0_42, %c0_43], %114 {strides = array<i32>} : memref<1x1xf32, #tpu.memory_space<vmem>>, vector<1x1xf32>,
    return
  }
}

</mosaic_0001>

<llo_original>
// kernel: joint_sivi_layer_forward.1
$region0: #{joint_sivi_layer_forward.1}
  #allocation0 [shape = 'u32[]', space=smem, size = 0x4, offset = 0x4, fixed_abs, tag = 'smem constant byte address 0x4 - core index']
  #allocation1 [shape = 'u32[144,128]{1,0:T(1,128)}', space=vmem, size = 0x12000, scoped, tag = 'internal scratch']
  %s0 = inlined_call_operand.vmem [shape: f32[3], index: 0, kind: input, shape index: {}]
  %s1 = inlined_call_operand.vmem [shape: f32[8,32], index: 1, kind: input, shape index: {}]
  %s2 = inlined_call_operand.vmem [shape: f32[32,84], index: 2, kind: input, shape index: {}]
  %s3 = inlined_call_operand.vmem [shape: f32[1,84], index: 3, kind: input, shape index: {}]
  %s4 = inlined_call_operand.vmem [shape: f32[84,84], index: 4, kind: input, shape index: {}]
  %s5 = inlined_call_operand.vmem [shape: f32[1,84], index: 5, kind: input, shape index: {}]
  %s6 = inlined_call_operand.vmem [shape: f32[84,136], index: 6, kind: input, shape index: {}]
  %s7 = inlined_call_operand.vmem [shape: f32[1,136], index: 7, kind: input, shape index: {}]
  %s8 = inlined_call_operand.vmem [shape: f32[16,16], index: 8, kind: input, shape index: {}]
  %s9 = inlined_call_operand.vmem [shape: f32[8,128], index: 9, kind: input, shape index: {}]
  %s10 = inlined_call_operand.vmem [shape: f32[8,8], index: 10, kind: input, shape index: {}]
  %s11 = inlined_call_operand.hbm [shape: f32[16,8], index: 11, kind: output, shape index: {0}]
  %s12 = inlined_call_operand.hbm [shape: f32[1,1], index: 12, kind: output, shape index: {1}]
  %13 = xla_tuple %s11, %s12
  %s14 = sld [smem:[#allocation0]]
  $region66: #{joint_sivi_layer_forward.1} parent=0
    _
  %s16 = ssub.s32 1, %s14
  %s17 = scalar_select 0, %s16, %s14
  $region1: #{joint_sivi_layer_forward.1} parent=0
    #allocation2 [shape = 'u8[512]{0}', space=smem, size = 0x200, scoped, tag = 'input window, operand 0, single buffered']
    #allocation3 [shape = 's32[1]{0}', space=sflag, size = 0x4, scoped, tag = 'scoped memory for joint_sivi_layer_forward.1']
    #allocation4 [shape = 's32[1]{0}', space=sflag, size = 0x4, scoped, tag = 'scoped memory for joint_sivi_layer_forward.1']
    #allocation5 [shape = 'u8[8192]{0}', space=vmem, size = 0x2000, scoped, tag = 'output window, operand 0, single buffered']
    #allocation6 [shape = 'u8[512]{0}', space=vmem, size = 0x400, scoped, tag = 'output window, operand 1, single buffered']
    #allocation7 [shape = 's32[1]{0}', space=sflag, size = 0x4, scoped, tag = 'scoped memory for joint_sivi_layer_forward.1']
    %18 = vsyncpa [#allocation4], 0
    %19 = vsyncpa [#allocation3], 0
    %20 = vsyncpa [#allocation7], 0
    // Predicated region
    $region2: #{joint_sivi_layer_forward.1} parent=1 // pred_check
      _
    $region3: #{joint_sivi_layer_forward.1} parent=1 // pred_check_branch
      %22 = sbr.rel (0) target = $region5
    $region4: #{joint_sivi_layer_forward.1} parent=1 // pred_region
      %s24 = ssub.s32 16, 16
      %25 = vsyncadd [#allocation4], %s24
      %s27 = sshll.u32 %s0, 4
      %s28 = int_to_ptr.vmem [resolvable:$true] %s27
      %30 = dma.vmem_to_smem %s28, 16, [#allocation2], [#allocation4]
    $region5: #{joint_sivi_layer_forward.1} parent=1 // pred_fallthru
      _
    // Predicated region
    $region6: #{joint_sivi_layer_forward.1} parent=1 // pred_check
      _
    $region7: #{joint_sivi_layer_forward.1} parent=1 // pred_check_branch
      %32 = sbr.rel (0) target = $region9
    $region8: #{joint_sivi_layer_forward.1} parent=1 // pred_region
      _
    $region9: #{joint_sivi_layer_forward.1} parent=1 // pred_fallthru
      _
    // Predicated region
    $region10: #{joint_sivi_layer_forward.1} parent=1 // pred_check
      _
    $region11: #{joint_sivi_layer_forward.1} parent=1 // pred_check_branch
      %34 = sbr.rel (0) target = $region13
    $region12: #{joint_sivi_layer_forward.1} parent=1 // pred_region
      _
    $region13: #{joint_sivi_layer_forward.1} parent=1 // pred_fallthru
      _
    // Predicated region
    $region14: #{joint_sivi_layer_forward.1} parent=1 // pred_check
      _
    $region15: #{joint_sivi_layer_forward.1} parent=1 // pred_check_branch
      %36 = sbr.rel (0) target = $region17
    $region16: #{joint_sivi_layer_forward.1} parent=1 // pred_region
      _
    $region17: #{joint_sivi_layer_forward.1} parent=1 // pred_fallthru
      _
    // Predicated region
    $region18: #{joint_sivi_layer_forward.1} parent=1 // pred_check
      _
    $region19: #{joint_sivi_layer_forward.1} parent=1 // pred_check_branch
      %38 = sbr.rel (0) target = $region21
    $region20: #{joint_sivi_layer_forward.1} parent=1 // pred_region
      _
    $region21: #{joint_sivi_layer_forward.1} parent=1 // pred_fallthru
      _
    // Predicated region
    $region22: #{joint_sivi_layer_forward.1} parent=1 // pred_check
      _
    $region23: #{joint_sivi_layer_forward.1} parent=1 // pred_check_branch
      %40 = sbr.rel (0) target = $region25
    $region24: #{joint_sivi_layer_forward.1} parent=1 // pred_region
      _
    $region25: #{joint_sivi_layer_forward.1} parent=1 // pred_fallthru
      _
    // Predicated region
    $region26: #{joint_sivi_layer_forward.1} parent=1 // pred_check
      _
    $region27: #{joint_sivi_layer_forward.1} parent=1 // pred_check_branch
      %42 = sbr.rel (0) target = $region29
    $region28: #{joint_sivi_layer_forward.1} parent=1 // pred_region
      _
    $region29: #{joint_sivi_layer_forward.1} parent=1 // pred_fallthru
      _
    // Predicated region
    $region30: #{joint_sivi_layer_forward.1} parent=1 // pred_check
      _
    $region31: #{joint_sivi_layer_forward.1} parent=1 // pred_check_branch
      %44 = sbr.rel (0) target = $region33
    $region32: #{joint_sivi_layer_forward.1} parent=1 // pred_region
      _
    $region33: #{joint_sivi_layer_forward.1} parent=1 // pred_fallthru
      _
    // Predicated region
    $region34: #{joint_sivi_layer_forward.1} parent=1 // pred_check
      _
    $region35: #{joint_sivi_layer_forward.1} parent=1 // pred_check_branch
      %46 = sbr.rel (0) target = $region37
    $region36: #{joint_sivi_layer_forward.1} parent=1 // pred_region
      _
    $region37: #{joint_sivi_layer_forward.1} parent=1 // pred_fallthru
      _
    // Predicated region
    $region38: #{joint_sivi_layer_forward.1} parent=1 // pred_check
      _
    $region39: #{joint_sivi_layer_forward.1} parent=1 // pred_check_branch
      %48 = sbr.rel (0) target = $region41
    $region40: #{joint_sivi_layer_forward.1} parent=1 // pred_region
      _
    $region41: #{joint_sivi_layer_forward.1} parent=1 // pred_fallthru
      _
    // Predicated region
    $region42: #{joint_sivi_layer_forward.1} parent=1 // pred_check
      _
    $region43: #{joint_sivi_layer_forward.1} parent=1 // pred_check_branch
      %50 = sbr.rel (0) target = $region45
    $region44: #{joint_sivi_layer_forward.1} parent=1 // pred_region
      _
    $region45: #{joint_sivi_layer_forward.1} parent=1 // pred_fallthru
      _
    // Predicated region
    $region46: #{joint_sivi_layer_forward.1} parent=1 // pred_check
      _
    $region47: #{joint_sivi_layer_forward.1} parent=1 // pred_check_branch
      %52 = sbr.rel (0) target = $region49
    $region48: #{joint_sivi_layer_forward.1} parent=1 // pred_region
      %53 = dma.done [#allocation4], 16
    $region49: #{joint_sivi_layer_forward.1} parent=1 // pred_fallthru
      _
    %54 = sfence
    %v55 = vld [vmem:[%s1] sm:$0xff]
    %v56 = vld [vmem:[%s2] sm:$0xff]
    %v57 = vld [vmem:[%s2 + $0x8] sm:$0xff]
    %v58 = vld [vmem:[%s2 + $0x10] sm:$0xff]
    %v59 = vld [vmem:[%s2 + $0x18] sm:$0xff]
    %v60 = vld [vmem:[%s3] sm:$0x1]
    %v62 = vlaneseq
    %v63 = vshrl.u32 %v62, 7
    %v64 = vsub.s32 0, %v63
    %v65 = vrot.slane %v60, %v64
    %vm67 = vcmask 261120
    %v69 = vsel %vm67, %v55, 0
    %71 = vmatprep.subr.mxu0 0.0
    %72 = vmatpush1.msra.mxu0 %v56
    %73 = vmatprep.subr.mxu0 0.0
    %74 = vmatpush1.msra.mxu0 %v57
    %75 = vmatprep.subr.mxu0 0.0
    %76 = vmatpush1.msra.mxu0 %v58
    %77 = vmatprep.subr.mxu0 0.0
    %78 = vmatpush1.msra.mxu0 %v59
    %79 = vmatprep.subr.mxu0 0.0
    %80 = vmatpush1.msra.mxu0 0.0
    %81 = vmatprep.subr.mxu0 0.0
    %82 = vmatpush1.msra.mxu0 0.0
    %83 = vmatprep.subr.mxu0 0.0
    %84 = vmatpush1.msra.mxu0 0.0
    %85 = vmatprep.subr.mxu0 0.0
    %86 = vmatpush1.msra.mxu0 0.0
    %87 = vmatprep.subr.mxu0 0.0
    %88 = vmatpush1.msra.mxu0 0.0
    %89 = vmatprep.subr.mxu0 0.0
    %90 = vmatpush1.msra.mxu0 0.0
    %91 = vmatprep.subr.mxu0 0.0
    %92 = vmatpush1.msra.mxu0 0.0
    %93 = vmatprep.subr.mxu0 0.0
    %94 = vmatpush1.msra.mxu0 0.0
    %95 = vmatprep.subr.mxu0 0.0
    %96 = vmatpush1.msra.mxu0 0.0
    %97 = vmatprep.subr.mxu0 0.0
    %98 = vmatpush1.msra.mxu0 0.0
    %99 = vmatprep.subr.mxu0 0.0
    %100 = vmatpush1.msra.mxu0 0.0
    %101 = vmatprep.subr.mxu0 0.0
    %102 = vmatpush1.msra.mxu0 0.0
    %103 = vmatprep.subr.mxu0 0.0
    %104 = vmatpush1.msra.mxu0 0.0
    %105 = vmatprep.subr.mxu0 0.0
    %106 = vmatpush1.msra.mxu0 0.0
    %107 = vmatprep.subr.mxu0 0.0
    %108 = vmatpush1.msra.mxu0 0.0
    %109 = vmatprep.subr.mxu0 0.0
    %110 = vmatpush1.msra.mxu0 0.0
    %111 = vmatprep.subr.mxu0 0.0
    %112 = vmatpush1.msra.mxu0 0.0
    %113 = vmatprep.subr.mxu0 0.0
    %114 = vmatpush1.msra.mxu0 0.0
    %115 = vmatprep.subr.mxu0 0.0
    %116 = vmatpush1.msra.mxu0 0.0
    %117 = vmatprep.subr.mxu0 0.0
    %118 = vmatpush1.msra.mxu0 0.0
    %119 = vmatprep.subr.mxu0 0.0
    %120 = vmatpush1.msra.mxu0 0.0
    %121 = vmatprep.subr.mxu0 0.0
    %122 = vmatpush1.msra.mxu0 0.0
    %123 = vmatprep.subr.mxu0 0.0
    %124 = vmatpush1.msra.mxu0 0.0
    %125 = vmatprep.subr.mxu0 0.0
    %126 = vmatpush1.msra.mxu0 0.0
    %127 = vmatprep.subr.mxu0 0.0
    %128 = vmatpush1.msra.mxu0 0.0
    %129 = vmatprep.subr.mxu0 0.0
    %130 = vmatpush1.msra.mxu0 0.0
    %131 = vmatprep.subr.mxu0 0.0
    %132 = vmatpush1.msra.mxu0 0.0
    %133 = vmatprep.subr.mxu0 0.0
    %134 = vmatpush1.msra.mxu0 0.0
    %135 = vmatprep.mubr.f32.mxu0 0.0
    %136 = vmatmul.mubr.f32.gmra.mrb[0].mxu0 %v69
    %v137 = vpop.f32.mrb[0].mxu0
    %v138 = vadd.f32 %v65, %v137
    %v139 = vpop.f32.mrb[0].mxu0
    %140 = vdwg.mxu0
    %v141 = vtanh.pop %v138
    %v142 = vld [vmem:[%s4] sm:$0xff]
    %v143 = vld [vmem:[%s4 + $0x8] sm:$0xff]
    %v144 = vld [vmem:[%s4 + $0x10] sm:$0xff]
    %v145 = vld [vmem:[%s4 + $0x18] sm:$0xff]
    %v146 = vld [vmem:[%s4 + $0x20] sm:$0xff]
    %v147 = vld [vmem:[%s4 + $0x28] sm:$0xff]
    %v148 = vld [vmem:[%s4 + $0x30] sm:$0xff]
    %v149 = vld [vmem:[%s4 + $0x38] sm:$0xff]
    %v150 = vld [vmem:[%s4 + $0x40] sm:$0xff]
    %v151 = vld [vmem:[%s4 + $0x48] sm:$0xff]
    %v152 = vld [vmem:[%s4 + $0x50] sm:$0xf]
    %v153 = vld [vmem:[%s5] sm:$0x1]
    %v155 = vlaneseq
    %v156 = vshrl.u32 %v155, 7
    %v157 = vsub.s32 0, %v156
    %v158 = vrot.slane %v153, %v157
    %vm160 = vcmask 687104
    %v162 = vsel %vm160, %v141, 0
    %vm164 = vcmask 1043456
    %v166 = vsel %vm164, %v152, 0
    %168 = vmatprep.subr.mxu0 0.0
    %169 = vmatpush1.msra.mxu0 %v142
    %170 = vmatprep.subr.mxu0 0.0
    %171 = vmatpush1.msra.mxu0 %v143
    %172 = vmatprep.subr.mxu0 0.0
    %173 = vmatpush1.msra.mxu0 %v144
    %174 = vmatprep.subr.mxu0 0.0
    %175 = vmatpush1.msra.mxu0 %v145
    %176 = vmatprep.subr.mxu0 0.0
    %177 = vmatpush1.msra.mxu0 %v146
    %178 = vmatprep.subr.mxu0 0.0
    %179 = vmatpush1.msra.mxu0 %v147
    %180 = vmatprep.subr.mxu0 0.0
    %181 = vmatpush1.msra.mxu0 %v148
    %182 = vmatprep.subr.mxu0 0.0
    %183 = vmatpush1.msra.mxu0 %v149
    %184 = vmatprep.subr.mxu0 0.0
    %185 = vmatpush1.msra.mxu0 %v150
    %186 = vmatprep.subr.mxu0 0.0
    %187 = vmatpush1.msra.mxu0 %v151
    %188 = vmatprep.subr.mxu0 0.0
    %189 = vmatpush1.msra.mxu0 %v166
    %190 = vmatprep.subr.mxu0 0.0
    %191 = vmatpush1.msra.mxu0 0.0
    %192 = vmatprep.subr.mxu0 0.0
    %193 = vmatpush1.msra.mxu0 0.0
    %194 = vmatprep.subr.mxu0 0.0
    %195 = vmatpush1.msra.mxu0 0.0
    %196 = vmatprep.subr.mxu0 0.0
    %197 = vmatpush1.msra.mxu0 0.0
    %198 = vmatprep.subr.mxu0 0.0
    %199 = vmatpush1.msra.mxu0 0.0
    %200 = vmatprep.subr.mxu0 0.0
    %201 = vmatpush1.msra.mxu0 0.0
    %202 = vmatprep.subr.mxu0 0.0
    %203 = vmatpush1.msra.mxu0 0.0
    %204 = vmatprep.subr.mxu0 0.0
    %205 = vmatpush1.msra.mxu0 0.0
    %206 = vmatprep.subr.mxu0 0.0
    %207 = vmatpush1.msra.mxu0 0.0
    %208 = vmatprep.subr.mxu0 0.0
    %209 = vmatpush1.msra.mxu0 0.0
    %210 = vmatprep.subr.mxu0 0.0
    %211 = vmatpush1.msra.mxu0 0.0
    %212 = vmatprep.subr.mxu0 0.0
    %213 = vmatpush1.msra.mxu0 0.0
    %214 = vmatprep.subr.mxu0 0.0
    %215 = vmatpush1.msra.mxu0 0.0
    %216 = vmatprep.subr.mxu0 0.0
    %217 = vmatpush1.msra.mxu0 0.0
    %218 = vmatprep.subr.mxu0 0.0
    %219 = vmatpush1.msra.mxu0 0.0
    %220 = vmatprep.subr.mxu0 0.0
    %221 = vmatpush1.msra.mxu0 0.0
    %222 = vmatprep.subr.mxu0 0.0
    %223 = vmatpush1.msra.mxu0 0.0
    %224 = vmatprep.subr.mxu0 0.0
    %225 = vmatpush1.msra.mxu0 0.0
    %226 = vmatprep.subr.mxu0 0.0
    %227 = vmatpush1.msra.mxu0 0.0
    %228 = vmatprep.subr.mxu0 0.0
    %229 = vmatpush1.msra.mxu0 0.0
    %230 = vmatprep.subr.mxu0 0.0
    %231 = vmatpush1.msra.mxu0 0.0
    %232 = vmatprep.mubr.f32.mxu0 0.0
    %233 = vmatmul.mubr.f32.gmra.mrb[0].mxu0 %v162
    %v234 = vpop.f32.mrb[0].mxu0
    %v235 = vadd.f32 %v158, %v234
    %v236 = vpop.f32.mrb[0].mxu0
    %237 = vdwg.mxu0
    %v238 = vtanh.pop %v235
    %v239 = vld [vmem:[%s6] sm:$0xff]
    %v240 = vld [vmem:[%s6 + $0x8] sm:$0xff]
    %v241 = vld [vmem:[%s6 + $0x10] sm:$0xff]
    %v242 = vld [vmem:[%s6 + $0x18] sm:$0xff]
    %v243 = vld [vmem:[%s6 + $0x20] sm:$0xff]
    %v244 = vld [vmem:[%s6 + $0x28] sm:$0xff]
    %v245 = vld [vmem:[%s6 + $0x30] sm:$0xff]
    %v246 = vld [vmem:[%s6 + $0x38] sm:$0xff]
    %v247 = vld [vmem:[%s6 + $0x40] sm:$0xff]
    %v248 = vld [vmem:[%s6 + $0x48] sm:$0xff]
    %v249 = vld [vmem:[%s6 + $0x50] sm:$0xff]
    %v250 = vld [vmem:[%s6 + $0x58] sm:$0xff]
    %v251 = vld [vmem:[%s6 + $0x60] sm:$0xff]
    %v252 = vld [vmem:[%s6 + $0x68] sm:$0xff]
    %v253 = vld [vmem:[%s6 + $0x70] sm:$0xff]
    %v254 = vld [vmem:[%s6 + $0x78] sm:$0xff]
    %v255 = vld [vmem:[%s6 + $0x80] sm:$0xff]
    %v256 = vld [vmem:[%s6 + $0x88] sm:$0xff]
    %v257 = vld [vmem:[%s6 + $0x90] sm:$0xff]
    %v258 = vld [vmem:[%s6 + $0x98] sm:$0xff]
    %v259 = vld [vmem:[%s6 + $0xa0] sm:$0xf]
    %v260 = vld [vmem:[%s6 + $0xa8] sm:$0xf]
    %v261 = vld [vmem:[%s7] sm:$0x3]
    %v263 = vlaneseq
    %v264 = vshrl.u32 %v263, 7
    %v265 = vsub.s32 0, %v264
    %v266 = vrot.slane %v261, %v265
    %v267 = vlaneseq
    %v268 = vshrl.u32 %v267, 7
    %v269 = vsub.s32 1, %v268
    %v270 = vrot.slane %v261, %v269
    %v274 = vsel %vm160, %v238, 0
    %v277 = vsel %vm164, %v259, 0
    %v280 = vsel %vm164, %v260, 0
    %282 = vmatprep.subr.mxu0 %v240
    %283 = vmatpush1.msra.mxu0 %v239
    %284 = vmatprep.subr.mxu0 %v242
    %285 = vmatpush1.msra.mxu0 %v241
    %286 = vmatprep.subr.mxu0 %v244
    %287 = vmatpush1.msra.mxu0 %v243
    %288 = vmatprep.subr.mxu0 %v246
    %289 = vmatpush1.msra.mxu0 %v245
    %290 = vmatprep.subr.mxu0 %v248
    %291 = vmatpush1.msra.mxu0 %v247
    %292 = vmatprep.subr.mxu0 %v250
    %293 = vmatpush1.msra.mxu0 %v249
    %294 = vmatprep.subr.mxu0 %v252
    %295 = vmatpush1.msra.mxu0 %v251
    %296 = vmatprep.subr.mxu0 %v254
    %297 = vmatpush1.msra.mxu0 %v253
    %298 = vmatprep.subr.mxu0 %v256
    %299 = vmatpush1.msra.mxu0 %v255
    %300 = vmatprep.subr.mxu0 %v258
    %301 = vmatpush1.msra.mxu0 %v257
    %302 = vmatprep.subr.mxu0 %v280
    %303 = vmatpush1.msra.mxu0 %v277
    %304 = vmatprep.subr.mxu0 0.0
    %305 = vmatpush1.msra.mxu0 0.0
    %306 = vmatprep.subr.mxu0 0.0
    %307 = vmatpush1.msra.mxu0 0.0
    %308 = vmatprep.subr.mxu0 0.0
    %309 = vmatpush1.msra.mxu0 0.0
    %310 = vmatprep.subr.mxu0 0.0
    %311 = vmatpush1.msra.mxu0 0.0
    %312 = vmatprep.subr.mxu0 0.0
    %313 = vmatpush1.msra.mxu0 0.0
    %314 = vmatprep.subr.mxu0 0.0
    %315 = vmatpush1.msra.mxu0 0.0
    %316 = vmatprep.subr.mxu0 0.0
    %317 = vmatpush1.msra.mxu0 0.0
    %318 = vmatprep.subr.mxu0 0.0
    %319 = vmatpush1.msra.mxu0 0.0
    %320 = vmatprep.subr.mxu0 0.0
    %321 = vmatpush1.msra.mxu0 0.0
    %322 = vmatprep.subr.mxu0 0.0
    %323 = vmatpush1.msra.mxu0 0.0
    %324 = vmatprep.subr.mxu0 0.0
    %325 = vmatpush1.msra.mxu0 0.0
    %326 = vmatprep.subr.mxu0 0.0
    %327 = vmatpush1.msra.mxu0 0.0
    %328 = vmatprep.subr.mxu0 0.0
    %329 = vmatpush1.msra.mxu0 0.0
    %330 = vmatprep.subr.mxu0 0.0
    %331 = vmatpush1.msra.mxu0 0.0
    %332 = vmatprep.subr.mxu0 0.0
    %333 = vmatpush1.msra.mxu0 0.0
    %334 = vmatprep.subr.mxu0 0.0
    %335 = vmatpush1.msra.mxu0 0.0
    %336 = vmatprep.subr.mxu0 0.0
    %337 = vmatpush1.msra.mxu0 0.0
    %338 = vmatprep.subr.mxu0 0.0
    %339 = vmatpush1.msra.mxu0 0.0
    %340 = vmatprep.subr.mxu0 0.0
    %341 = vmatpush1.msra.mxu0 0.0
    %342 = vmatprep.subr.mxu0 0.0
    %343 = vmatpush1.msra.mxu0 0.0
    %344 = vmatprep.subr.mxu0 0.0
    %345 = vmatpush1.msra.mxu0 0.0
    %346 = vmatprep.mubr.f32.mxu0 0.0
    %347 = vmatmul.mubr.f32.gmra.mrb[0].mxu0 %v274
    %v348 = vpop.f32.mrb[0].mxu0
    %v349 = vadd.f32 %v266, %v348
    %v350 = vpop.f32.mrb[0].mxu0
    %v351 = vadd.f32 %v270, %v350
    %352 = vdwg.mxu0
    %s353 = sld [smem:[#allocation2]]
    %v354 = vstv %s353
    %v355 = vmax.f32 %v354, 0.0
    %v356 = vand.u32 2147483647, %v354
    %v357 = vsub.f32 0.0, %v356
    %v358 = vmul.f32 %v357, 1.442695
    %v359 = vpow.pop %v358
    %v360 = vadd.f32 %v359, 1.0
    %v361 = vlog2.pop %v360
    %v362 = vmul.f32 %v361, 0.6931472
    %v363 = vmul.f32 -0.5, %v359
    %v364 = vadd.f32 %v363, 1.0
    %v365 = vmul.f32 %v364, %v359
    %v366 = vand.u32 2147483647, %v359
    %vm367 = vcmp.lt.f32.partialorder %v366, 0.0004427343
    %v368 = vsel %vm367, %v365, %v362
    %v369 = vadd.f32 %v355, %v368
    %s370 = sld [smem:[#allocation2 + $0x1]]
    %v371 = vstv %s370
    %v372 = vmax.f32 %v371, 0.0
    %v373 = vand.u32 2147483647, %v371
    %v374 = vsub.f32 0.0, %v373
    %v375 = vmul.f32 %v374, 1.442695
    %v376 = vpow.pop %v375
    %v377 = vadd.f32 %v376, 1.0
    %v378 = vlog2.pop %v377
    %v379 = vmul.f32 %v378, 0.6931472
    %v380 = vmul.f32 -0.5, %v376
    %v381 = vadd.f32 %v380, 1.0
    %v382 = vmul.f32 %v381, %v376
    %v383 = vand.u32 2147483647, %v376
    %vm384 = vcmp.lt.f32.partialorder %v383, 0.0004427343
    %v385 = vsel %vm384, %v382, %v379
    %v386 = vadd.f32 %v372, %v385
    %s387 = sld [smem:[#allocation2 + $0x2]]
    %v388 = vld [vmem:[%s9] sm:$0xff]
    %v389 = vmul.f32 %v369, %v388
    %v390 = vadd.f32 %v349, %v389
    %v391 = vld [vmem:[%s10] sm:$0xff]
    %v392 = vmul.f32 %v386, %v391
    %v393 = vadd.f32 %v351, %v392
    %v394 = vlaneseq
    %v395 = vshrl.u32 %v394, 7
    %v396 = vadd.s32 %v395, 8
    %v397 = vlaneseq
    %v398 = vand.u32 %v397, 127
    %v399 = vmul.u32 %v395, 8
    %v400 = vmul.u32 %v396, 8
    %vm401 = vcmp.ge.s32.totalorder %v398, %v399
    %vm402 = vcmp.ge.s32.totalorder %v398, %v400
    %v403 = vadd.s32 %v395, 1
    %v404 = vadd.s32 %v396, 1
    %v405 = vmul.u32 %v403, 8
    %v406 = vmul.u32 %v404, 8
    %vm407 = vcmp.lt.s32.totalorder %v398, %v405
    %vm408 = vcmp.lt.s32.totalorder %v398, %v406
    %vm409 = vmand %vm401, %vm407
    %vm410 = vmand %vm402, %vm408
    %v411 = vsel %vm409, 1, 0
    %v412 = vsel %vm410, 1, 0
    %v413 = vcvt.s32.f32 %v411
    %v414 = vcvt.s32.f32 %v412
    %v415 = vmul.u32 %v398, 2
    %vm416 = vcmp.ge.s32.totalorder %v395, %v415
    %vm417 = vcmp.ge.s32.totalorder %v396, %v415
    %v418 = vadd.s32 %v398, 1
    %v419 = vmul.u32 %v418, 2
    %vm420 = vcmp.lt.s32.totalorder %v395, %v419
    %vm421 = vcmp.lt.s32.totalorder %v396, %v419
    %vm422 = vmand %vm416, %vm420
    %vm423 = vmand %vm417, %vm421
    %v424 = vsel %vm422, 1, 0
    %v425 = vsel %vm423, 1, 0
    %v426 = vcvt.s32.f32 %v424
    %v427 = vcvt.s32.f32 %v425
    %v428 = vadd.s32 %v395, 16
    %v429 = vadd.s32 %v395, 24
    %v430 = vadd.s32 %v395, 32
    %v431 = vadd.s32 %v395, 40
    %v432 = vadd.s32 %v395, 48
    %v433 = vadd.s32 %v395, 56
    %v434 = vadd.s32 %v395, 64
    %v435 = vadd.s32 %v395, 72
    %v436 = vadd.s32 %v395, 80
    %v437 = vadd.s32 %v395, 88
    %v438 = vadd.s32 %v395, 96
    %v439 = vadd.s32 %v395, 104
    %v440 = vadd.s32 %v395, 112
    %v441 = vadd.s32 %v395, 120
    %v442 = vcvt.s32.f32 %v395
    %v443 = vcvt.s32.f32 %v396
    %v444 = vcvt.s32.f32 %v428
    %v445 = vcvt.s32.f32 %v429
    %v446 = vcvt.s32.f32 %v430
    %v447 = vcvt.s32.f32 %v431
    %v448 = vcvt.s32.f32 %v432
    %v449 = vcvt.s32.f32 %v433
    %v450 = vcvt.s32.f32 %v434
    %v451 = vcvt.s32.f32 %v435
    %v452 = vcvt.s32.f32 %v436
    %v453 = vcvt.s32.f32 %v437
    %v454 = vcvt.s32.f32 %v438
    %v455 = vcvt.s32.f32 %v439
    %v456 = vcvt.s32.f32 %v440
    %v457 = vcvt.s32.f32 %v441
    %v458 = vcvt.s32.f32 %v398
    %v459 = vsub.f32 %v442, %v458
    %v460 = vsub.f32 %v443, %v458
    %v461 = vsub.f32 %v444, %v458
    %v462 = vsub.f32 %v445, %v458
    %v463 = vsub.f32 %v446, %v458
    %v464 = vsub.f32 %v447, %v458
    %v465 = vsub.f32 %v448, %v458
    %v466 = vsub.f32 %v449, %v458
    %v467 = vsub.f32 %v450, %v458
    %v468 = vsub.f32 %v451, %v458
    %v469 = vsub.f32 %v452, %v458
    %v470 = vsub.f32 %v453, %v458
    %v471 = vsub.f32 %v454, %v458
    %v472 = vsub.f32 %v455, %v458
    %v473 = vsub.f32 %v456, %v458
    %v474 = vsub.f32 %v457, %v458
    %v475 = vrcp.pop 8.0
    %v476 = vmul.f32 %v459, %v475
    %v477 = vmul.f32 %v460, %v475
    %v478 = vmul.f32 %v461, %v475
    %v479 = vmul.f32 %v462, %v475
    %v480 = vmul.f32 %v463, %v475
    %v481 = vmul.f32 %v464, %v475
    %v482 = vmul.f32 %v465, %v475
    %v483 = vmul.f32 %v466, %v475
    %v484 = vmul.f32 %v467, %v475
    %v485 = vmul.f32 %v468, %v475
    %v486 = vmul.f32 %v469, %v475
    %v487 = vmul.f32 %v470, %v475
    %v488 = vmul.f32 %v471, %v475
    %v489 = vmul.f32 %v472, %v475
    %v490 = vmul.f32 %v473, %v475
    %v491 = vmul.f32 %v474, %v475
    %v492 = vfloor.f32 %v476
    %v493 = vfloor.f32 %v477
    %v494 = vfloor.f32 %v478
    %v495 = vfloor.f32 %v479
    %v496 = vfloor.f32 %v480
    %v497 = vfloor.f32 %v481
    %v498 = vfloor.f32 %v482
    %v499 = vfloor.f32 %v483
    %v500 = vfloor.f32 %v484
    %v501 = vfloor.f32 %v485
    %v502 = vfloor.f32 %v486
    %v503 = vfloor.f32 %v487
    %v504 = vfloor.f32 %v488
    %v505 = vfloor.f32 %v489
    %v506 = vfloor.f32 %v490
    %v507 = vfloor.f32 %v491
    %vm508 = vcmp.eq.f32.partialorder %v476, %v492
    %vm509 = vcmp.eq.f32.partialorder %v477, %v493
    %vm510 = vcmp.eq.f32.partialorder %v478, %v494
    %vm511 = vcmp.eq.f32.partialorder %v479, %v495
    %vm512 = vcmp.eq.f32.partialorder %v480, %v496
    %vm513 = vcmp.eq.f32.partialorder %v481, %v497
    %vm514 = vcmp.eq.f32.partialorder %v482, %v498
    %vm515 = vcmp.eq.f32.partialorder %v483, %v499
    %vm516 = vcmp.eq.f32.partialorder %v484, %v500
    %vm517 = vcmp.eq.f32.partialorder %v485, %v501
    %vm518 = vcmp.eq.f32.partialorder %v486, %v502
    %vm519 = vcmp.eq.f32.partialorder %v487, %v503
    %vm520 = vcmp.eq.f32.partialorder %v488, %v504
    %vm521 = vcmp.eq.f32.partialorder %v489, %v505
    %vm522 = vcmp.eq.f32.partialorder %v490, %v506
    %vm523 = vcmp.eq.f32.partialorder %v491, %v507
    %v524 = vsel %vm508, 1, 0
    %v525 = vsel %vm509, 1, 0
    %v526 = vsel %vm510, 1, 0
    %v527 = vsel %vm511, 1, 0
    %v528 = vsel %vm512, 1, 0
    %v529 = vsel %vm513, 1, 0
    %v530 = vsel %vm514, 1, 0
    %v531 = vsel %vm515, 1, 0
    %v532 = vsel %vm516, 1, 0
    %v533 = vsel %vm517, 1, 0
    %v534 = vsel %vm518, 1, 0
    %v535 = vsel %vm519, 1, 0
    %v536 = vsel %vm520, 1, 0
    %v537 = vsel %vm521, 1, 0
    %v538 = vsel %vm522, 1, 0
    %v539 = vsel %vm523, 1, 0
    %v540 = vcvt.s32.f32 %v524
    %v541 = vcvt.s32.f32 %v525
    %v542 = vcvt.s32.f32 %v526
    %v543 = vcvt.s32.f32 %v527
    %v544 = vcvt.s32.f32 %v528
    %v545 = vcvt.s32.f32 %v529
    %v546 = vcvt.s32.f32 %v530
    %v547 = vcvt.s32.f32 %v531
    %v548 = vcvt.s32.f32 %v532
    %v549 = vcvt.s32.f32 %v533
    %v550 = vcvt.s32.f32 %v534
    %v551 = vcvt.s32.f32 %v535
    %v552 = vcvt.s32.f32 %v536
    %v553 = vcvt.s32.f32 %v537
    %v554 = vcvt.s32.f32 %v538
    %v555 = vcvt.s32.f32 %v539
    %v556 = vld [vmem:[%s8] sm:$0xff]
    %v557 = vld [vmem:[%s8 + $0x8] sm:$0xff]
    %vm558 = vcmask 130048
    %v560 = vsel %vm558, %v556, 0
    %v563 = vsel %vm558, %v557, 0
    %565 = vmatprep.subr.mxu0 0.0
    %566 = vmatpush1.msra.mxu0 %v413
    %567 = vmatprep.subr.mxu0 0.0
    %568 = vmatpush1.msra.mxu0 %v414
    %569 = vmatprep.subr.mxu0 0.0
    %570 = vmatpush1.msra.mxu0 0.0
    %571 = vmatprep.subr.mxu0 0.0
    %572 = vmatpush1.msra.mxu0 0.0
    %573 = vmatprep.subr.mxu0 0.0
    %574 = vmatpush1.msra.mxu0 0.0
    %575 = vmatprep.subr.mxu0 0.0
    %576 = vmatpush1.msra.mxu0 0.0
    %577 = vmatprep.subr.mxu0 0.0
    %578 = vmatpush1.msra.mxu0 0.0
    %579 = vmatprep.subr.mxu0 0.0
    %580 = vmatpush1.msra.mxu0 0.0
    %581 = vmatprep.subr.mxu0 0.0
    %582 = vmatpush1.msra.mxu0 0.0
    %583 = vmatprep.subr.mxu0 0.0
    %584 = vmatpush1.msra.mxu0 0.0
    %585 = vmatprep.subr.mxu0 0.0
    %586 = vmatpush1.msra.mxu0 0.0
    %587 = vmatprep.subr.mxu0 0.0
    %588 = vmatpush1.msra.mxu0 0.0
    %589 = vmatprep.subr.mxu0 0.0
    %590 = vmatpush1.msra.mxu0 0.0
    %591 = vmatprep.subr.mxu0 0.0
    %592 = vmatpush1.msra.mxu0 0.0
    %593 = vmatprep.subr.mxu0 0.0
    %594 = vmatpush1.msra.mxu0 0.0
    %595 = vmatprep.subr.mxu0 0.0
    %596 = vmatpush1.msra.mxu0 0.0
    %597 = vmatprep.subr.mxu0 0.0
    %598 = vmatpush1.msra.mxu0 0.0
    %599 = vmatprep.subr.mxu0 0.0
    %600 = vmatpush1.msra.mxu0 0.0
    %601 = vmatprep.subr.mxu0 0.0
    %602 = vmatpush1.msra.mxu0 0.0
    %603 = vmatprep.subr.mxu0 0.0
    %604 = vmatpush1.msra.mxu0 0.0
    %605 = vmatprep.subr.mxu0 0.0
    %606 = vmatpush1.msra.mxu0 0.0
    %607 = vmatprep.subr.mxu0 0.0
    %608 = vmatpush1.msra.mxu0 0.0
    %609 = vmatprep.subr.mxu0 0.0
    %610 = vmatpush1.msra.mxu0 0.0
    %611 = vmatprep.subr.mxu0 0.0
    %612 = vmatpush1.msra.mxu0 0.0
    %613 = vmatprep.subr.mxu0 0.0
    %614 = vmatpush1.msra.mxu0 0.0
    %615 = vmatprep.subr.mxu0 0.0
    %616 = vmatpush1.msra.mxu0 0.0
    %617 = vmatprep.subr.mxu0 0.0
    %618 = vmatpush1.msra.mxu0 0.0
    %619 = vmatprep.subr.mxu0 0.0
    %620 = vmatpush1.msra.mxu0 0.0
    %621 = vmatprep.subr.mxu0 0.0
    %622 = vmatpush1.msra.mxu0 0.0
    %623 = vmatprep.subr.mxu0 0.0
    %624 = vmatpush1.msra.mxu0 0.0
    %625 = vmatprep.subr.mxu0 0.0
    %626 = vmatpush1.msra.mxu0 0.0
    %627 = vmatprep.subr.mxu0 0.0
    %628 = vmatpush1.msra.mxu0 0.0
    %629 = vmatprep.mubr.f32.mxu0 0.0
    %630 = vmatmul.mubr.f32.gmra.mrb[0].mxu0 %v560
    %v631 = vpop.f32.mrb[0].mxu0
    %v632 = vadd.f32 0.0, %v631
    %v633 = vpop.f32.mrb[0].mxu0
    %634 = vmatprep.mubr.f32.mxu0 0.0
    %635 = vmatmul.mubr.f32.gmra.mrb[0].mxu0 %v563
    %v636 = vpop.f32.mrb[0].mxu0
    %v637 = vadd.f32 0.0, %v636
    %v638 = vpop.f32.mrb[0].mxu0
    %639 = vdwg.mxu0
    %vm640 = vcmask 64512
    %v642 = vsel %vm640, %v426, 0
    %v645 = vsel %vm640, %v427, 0
    %647 = vmatprep.subr.mxu0 0.0
    %648 = vmatpush1.msra.mxu0 %v390
    %649 = vmatprep.subr.mxu0 0.0
    %650 = vmatpush1.msra.mxu0 0.0
    %651 = vmatprep.subr.mxu0 0.0
    %652 = vmatpush1.msra.mxu0 0.0
    %653 = vmatprep.subr.mxu0 0.0
    %654 = vmatpush1.msra.mxu0 0.0
    %655 = vmatprep.subr.mxu0 0.0
    %656 = vmatpush1.msra.mxu0 0.0
    %657 = vmatprep.subr.mxu0 0.0
    %658 = vmatpush1.msra.mxu0 0.0
    %659 = vmatprep.subr.mxu0 0.0
    %660 = vmatpush1.msra.mxu0 0.0
    %661 = vmatprep.subr.mxu0 0.0
    %662 = vmatpush1.msra.mxu0 0.0
    %663 = vmatprep.subr.mxu0 0.0
    %664 = vmatpush1.msra.mxu0 0.0
    %665 = vmatprep.subr.mxu0 0.0
    %666 = vmatpush1.msra.mxu0 0.0
    %667 = vmatprep.subr.mxu0 0.0
    %668 = vmatpush1.msra.mxu0 0.0
    %669 = vmatprep.subr.mxu0 0.0
    %670 = vmatpush1.msra.mxu0 0.0
    %671 = vmatprep.subr.mxu0 0.0
    %672 = vmatpush1.msra.mxu0 0.0
    %673 = vmatprep.subr.mxu0 0.0
    %674 = vmatpush1.msra.mxu0 0.0
    %675 = vmatprep.subr.mxu0 0.0
    %676 = vmatpush1.msra.mxu0 0.0
    %677 = vmatprep.subr.mxu0 0.0
    %678 = vmatpush1.msra.mxu0 0.0
    %679 = vmatprep.subr.mxu0 0.0
    %680 = vmatpush1.msra.mxu0 0.0
    %681 = vmatprep.subr.mxu0 0.0
    %682 = vmatpush1.msra.mxu0 0.0
    %683 = vmatprep.subr.mxu0 0.0
    %684 = vmatpush1.msra.mxu0 0.0
    %685 = vmatprep.subr.mxu0 0.0
    %686 = vmatpush1.msra.mxu0 0.0
    %687 = vmatprep.subr.mxu0 0.0
    %688 = vmatpush1.msra.mxu0 0.0
    %689 = vmatprep.subr.mxu0 0.0
    %690 = vmatpush1.msra.mxu0 0.0
    %691 = vmatprep.subr.mxu0 0.0
    %692 = vmatpush1.msra.mxu0 0.0
    %693 = vmatprep.subr.mxu0 0.0
    %694 = vmatpush1.msra.mxu0 0.0
    %695 = vmatprep.subr.mxu0 0.0
    %696 = vmatpush1.msra.mxu0 0.0
    %697 = vmatprep.subr.mxu0 0.0
    %698 = vmatpush1.msra.mxu0 0.0
    %699 = vmatprep.subr.mxu0 0.0
    %700 = vmatpush1.msra.mxu0 0.0
    %701 = vmatprep.subr.mxu0 0.0
    %702 = vmatpush1.msra.mxu0 0.0
    %703 = vmatprep.subr.mxu0 0.0
    %704 = vmatpush1.msra.mxu0 0.0
    %705 = vmatprep.subr.mxu0 0.0
    %706 = vmatpush1.msra.mxu0 0.0
    %707 = vmatprep.subr.mxu0 0.0
    %708 = vmatpush1.msra.mxu0 0.0
    %709 = vmatprep.subr.mxu0 0.0
    %710 = vmatpush1.msra.mxu0 0.0
    %711 = vmatprep.mubr.f32.mxu0 0.0
    %712 = vmatmul.mubr.f32.gmra.mrb[0].mxu0 %v642
    %v713 = vpop.f32.mrb[0].mxu0
    %v714 = vadd.f32 0.0, %v713
    %v715 = vpop.f32.mrb[0].mxu0
    %716 = vmatprep.mubr.f32.mxu0 0.0
    %717 = vmatmul.mubr.f32.gmra.mrb[0].mxu0 %v645
    %v718 = vpop.f32.mrb[0].mxu0
    %v719 = vadd.f32 0.0, %v718
    %v720 = vpop.f32.mrb[0].mxu0
    %721 = vdwg.mxu0
    %722 = vmatprep.subr.mxu0 0.0
    %723 = vmatpush1.msra.mxu0 %v393
    %724 = vmatprep.subr.mxu0 0.0
    %725 = vmatpush1.msra.mxu0 0.0
    %726 = vmatprep.subr.mxu0 0.0
    %727 = vmatpush1.msra.mxu0 0.0
    %728 = vmatprep.subr.mxu0 0.0
    %729 = vmatpush1.msra.mxu0 0.0
    %730 = vmatprep.subr.mxu0 0.0
    %731 = vmatpush1.msra.mxu0 0.0
    %732 = vmatprep.subr.mxu0 0.0
    %733 = vmatpush1.msra.mxu0 0.0
    %734 = vmatprep.subr.mxu0 0.0
    %735 = vmatpush1.msra.mxu0 0.0
    %736 = vmatprep.subr.mxu0 0.0
    %737 = vmatpush1.msra.mxu0 0.0
    %738 = vmatprep.subr.mxu0 0.0
    %739 = vmatpush1.msra.mxu0 0.0
    %740 = vmatprep.subr.mxu0 0.0
    %741 = vmatpush1.msra.mxu0 0.0
    %742 = vmatprep.subr.mxu0 0.0
    %743 = vmatpush1.msra.mxu0 0.0
    %744 = vmatprep.subr.mxu0 0.0
    %745 = vmatpush1.msra.mxu0 0.0
    %746 = vmatprep.subr.mxu0 0.0
    %747 = vmatpush1.msra.mxu0 0.0
    %748 = vmatprep.subr.mxu0 0.0
    %749 = vmatpush1.msra.mxu0 0.0
    %750 = vmatprep.subr.mxu0 0.0
    %751 = vmatpush1.msra.mxu0 0.0
    %752 = vmatprep.subr.mxu0 0.0
    %753 = vmatpush1.msra.mxu0 0.0
    %754 = vmatprep.subr.mxu0 0.0
    %755 = vmatpush1.msra.mxu0 0.0
    %756 = vmatprep.subr.mxu0 0.0
    %757 = vmatpush1.msra.mxu0 0.0
    %758 = vmatprep.subr.mxu0 0.0
    %759 = vmatpush1.msra.mxu0 0.0
    %760 = vmatprep.subr.mxu0 0.0
    %761 = vmatpush1.msra.mxu0 0.0
    %762 = vmatprep.subr.mxu0 0.0
    %763 = vmatpush1.msra.mxu0 0.0
    %764 = vmatprep.subr.mxu0 0.0
    %765 = vmatpush1.msra.mxu0 0.0
    %766 = vmatprep.subr.mxu0 0.0
    %767 = vmatpush1.msra.mxu0 0.0
    %768 = vmatprep.subr.mxu0 0.0
    %769 = vmatpush1.msra.mxu0 0.0
    %770 = vmatprep.subr.mxu0 0.0
    %771 = vmatpush1.msra.mxu0 0.0
    %772 = vmatprep.subr.mxu0 0.0
    %773 = vmatpush1.msra.mxu0 0.0
    %774 = vmatprep.subr.mxu0 0.0
    %775 = vmatpush1.msra.mxu0 0.0
    %776 = vmatprep.subr.mxu0 0.0
    %777 = vmatpush1.msra.mxu0 0.0
    %778 = vmatprep.subr.mxu0 0.0
    %779 = vmatpush1.msra.mxu0 0.0
    %780 = vmatprep.subr.mxu0 0.0
    %781 = vmatpush1.msra.mxu0 0.0
    %782 = vmatprep.subr.mxu0 0.0
    %783 = vmatpush1.msra.mxu0 0.0
    %784 = vmatprep.subr.mxu0 0.0
    %785 = vmatpush1.msra.mxu0 0.0
    %786 = vmatprep.mubr.f32.mxu0 0.0
    %787 = vmatmul.mubr.f32.gmra.mrb[0].mxu0 %v642
    %v788 = vpop.f32.mrb[0].mxu0
    %v789 = vadd.f32 0.0, %v788
    %v790 = vpop.f32.mrb[0].mxu0
    %791 = vmatprep.mubr.f32.mxu0 0.0
    %792 = vmatmul.mubr.f32.gmra.mrb[0].mxu0 %v645
    %v793 = vpop.f32.mrb[0].mxu0
    %v794 = vadd.f32 0.0, %v793
    %v795 = vpop.f32.mrb[0].mxu0
    %796 = vdwg.mxu0
    %v797 = vmul.f32 %v632, %v714
    %v798 = vmul.f32 %v637, %v719
    %799 = vmatprep.subr.mxu0 0.0
    %800 = vmatpush1.msra.mxu0 %v540
    %801 = vmatprep.subr.mxu0 0.0
    %802 = vmatpush1.msra.mxu0 %v541
    %803 = vmatprep.subr.mxu0 0.0
    %804 = vmatpush1.msra.mxu0 %v542
    %805 = vmatprep.subr.mxu0 0.0
    %806 = vmatpush1.msra.mxu0 %v543
    %807 = vmatprep.subr.mxu0 0.0
    %808 = vmatpush1.msra.mxu0 %v544
    %809 = vmatprep.subr.mxu0 0.0
    %810 = vmatpush1.msra.mxu0 %v545
    %811 = vmatprep.subr.mxu0 0.0
    %812 = vmatpush1.msra.mxu0 %v546
    %813 = vmatprep.subr.mxu0 0.0
    %814 = vmatpush1.msra.mxu0 %v547
    %815 = vmatprep.subr.mxu0 0.0
    %816 = vmatpush1.msra.mxu0 %v548
    %817 = vmatprep.subr.mxu0 0.0
    %818 = vmatpush1.msra.mxu0 %v549
    %819 = vmatprep.subr.mxu0 0.0
    %820 = vmatpush1.msra.mxu0 %v550
    %821 = vmatprep.subr.mxu0 0.0
    %822 = vmatpush1.msra.mxu0 %v551
    %823 = vmatprep.subr.mxu0 0.0
    %824 = vmatpush1.msra.mxu0 %v552
    %825 = vmatprep.subr.mxu0 0.0
    %826 = vmatpush1.msra.mxu0 %v553
    %827 = vmatprep.subr.mxu0 0.0
    %828 = vmatpush1.msra.mxu0 %v554
    %829 = vmatprep.subr.mxu0 0.0
    %830 = vmatpush1.msra.mxu0 %v555
    %831 = vmatprep.subr.mxu0 0.0
    %832 = vmatpush1.msra.mxu0 0.0
    %833 = vmatprep.subr.mxu0 0.0
    %834 = vmatpush1.msra.mxu0 0.0
    %835 = vmatprep.subr.mxu0 0.0
    %836 = vmatpush1.msra.mxu0 0.0
    %837 = vmatprep.subr.mxu0 0.0
    %838 = vmatpush1.msra.mxu0 0.0
    %839 = vmatprep.subr.mxu0 0.0
    %840 = vmatpush1.msra.mxu0 0.0
    %841 = vmatprep.subr.mxu0 0.0
    %842 = vmatpush1.msra.mxu0 0.0
    %843 = vmatprep.subr.mxu0 0.0
    %844 = vmatpush1.msra.mxu0 0.0
    %845 = vmatprep.subr.mxu0 0.0
    %846 = vmatpush1.msra.mxu0 0.0
    %847 = vmatprep.subr.mxu0 0.0
    %848 = vmatpush1.msra.mxu0 0.0
    %849 = vmatprep.subr.mxu0 0.0
    %850 = vmatpush1.msra.mxu0 0.0
    %851 = vmatprep.subr.mxu0 0.0
    %852 = vmatpush1.msra.mxu0 0.0
    %853 = vmatprep.subr.mxu0 0.0
    %854 = vmatpush1.msra.mxu0 0.0
    %855 = vmatprep.subr.mxu0 0.0
    %856 = vmatpush1.msra.mxu0 0.0
    %857 = vmatprep.subr.mxu0 0.0
    %858 = vmatpush1.msra.mxu0 0.0
    %859 = vmatprep.subr.mxu0 0.0
    %860 = vmatpush1.msra.mxu0 0.0
    %861 = vmatprep.subr.mxu0 0.0
    %862 = vmatpush1.msra.mxu0 0.0
    %863 = vmatprep.mubr.f32.mxu0 0.0
    %864 = vmatmul.mubr.f32.gmra.mrb[0].mxu0 %v797
    %v865 = vpop.f32.mrb[0].mxu0
    %v866 = vadd.f32 %v789, %v865
    %v867 = vpop.f32.mrb[0].mxu0
    %868 = vmatprep.mubr.f32.mxu0 0.0
    %869 = vmatmul.mubr.f32.gmra.mrb[0].mxu0 %v798
    %v870 = vpop.f32.mrb[0].mxu0
    %v871 = vadd.f32 %v794, %v870
    %v872 = vpop.f32.mrb[0].mxu0
    %873 = vdwg.mxu0
    %874 = vst.msk [vmem:[#allocation5] sm:$0xff] %vm640, %v866
    %875 = vst.msk [vmem:[#allocation5 + $0x8] sm:$0xff] %vm640, %v871
    %v876 = vrcp.pop %v369
    %v877 = vmul.f32 1.0, %v876
    %v878 = vlog2.pop %v877
    %v879 = vmul.f32 %v878, 0.6931472
    %v880 = vmul.f32 %v369, %v369
    %v881 = vmul.f32 %v880, 0.5
    %v882 = vadd.f32 %v879, %v881
    %v883 = vsub.f32 %v882, 0.5
    %v884 = vmul.f32 %v349, %v349
    %v885 = vmul.f32 %v884, 0.5
    %v886 = vadd.f32 %v883, %v885
    %887 = vadd.xlane.f32.xlu0 %v886
    %v888 = vpop.xlane.xlu0 %887
    %v889 = vrot.slane %v888, 4
    %v890 = vadd.f32 %v888, %v889
    %v891 = vrot.slane %v890, 2
    %v892 = vadd.f32 %v890, %v891
    %v893 = vrot.slane %v892, 1
    %v894 = vadd.f32 %v892, %v893
    %s895 = vtos %v894
    %s896 = smul.f32 %s895, 0.125
    %s897 = sadd.f32 %s387, %s896
    %v898 = vstv %s897
    %vm899 = vcmask 0
    %900 = vst.msk [vmem:[#allocation6] sm:$0x1] %vm899, %v898
    // Predicated region
    $region50: #{joint_sivi_layer_forward.1} parent=1 // pred_check
      _
    $region51: #{joint_sivi_layer_forward.1} parent=1 // pred_check_branch
      %902 = sbr.rel (0) target = $region53
    $region52: #{joint_sivi_layer_forward.1} parent=1 // pred_region
      %s904 = ssub.s32 256, 256
      %905 = vsyncadd [#allocation3], %s904
      %s906 = sshll.u32 [#allocation5], 4
      %s907 = int_to_ptr.vmem [resolvable:$true] %s906
      %912 = dma.vmem_to_hbm [thread:$0]  %s907, 256, %s11, [#allocation3], 128, 128, 8
    $region53: #{joint_sivi_layer_forward.1} parent=1 // pred_fallthru
      _
    // Predicated region
    $region54: #{joint_sivi_layer_forward.1} parent=1 // pred_check
      _
    $region55: #{joint_sivi_layer_forward.1} parent=1 // pred_check_branch
      %914 = sbr.rel (0) target = $region57
    $region56: #{joint_sivi_layer_forward.1} parent=1 // pred_region
      %s916 = ssub.s32 16, 16
      %917 = vsyncadd [#allocation7], %s916
      %s919 = sshll.u32 [#allocation6], 4
      %s920 = int_to_ptr.vmem [resolvable:$true] %s919
      %922 = dma.vmem_to_hbm [thread:$0]  %s920, 16, %s12, [#allocation7]
    $region57: #{joint_sivi_layer_forward.1} parent=1 // pred_fallthru
      _
    // Predicated region
    $region58: #{joint_sivi_layer_forward.1} parent=1 // pred_check
      _
    $region59: #{joint_sivi_layer_forward.1} parent=1 // pred_check_branch
      %924 = sbr.rel (0) target = $region61
    $region60: #{joint_sivi_layer_forward.1} parent=1 // pred_region
      %925 = dma.done [#allocation3], 256
    $region61: #{joint_sivi_layer_forward.1} parent=1 // pred_fallthru
      _
    // Predicated region
    $region62: #{joint_sivi_layer_forward.1} parent=1 // pred_check
      _
    $region63: #{joint_sivi_layer_forward.1} parent=1 // pred_check_branch
      %927 = sbr.rel (0) target = $region65
    $region64: #{joint_sivi_layer_forward.1} parent=1 // pred_region
      %928 = dma.done [#allocation7], 16
    $region65: #{joint_sivi_layer_forward.1} parent=1 // pred_fallthru
      _
    %929 = vsyncpa [#allocation3], 1
    %930 = vsyncpa [#allocation7], 1
    %931 = vsyncpa [#allocation4], 1

</llo_original>
